<compile_context>
chip_gen: v7x
topology: tpu7x:2x2x1
jax: 0.10.0
libtpu: 0.0.40
codegen_flags: <defaults>
</compile_context>

<pallas_src>
import jax
import jax.numpy as jnp
from jax.experimental import pallas as pl
from jax.experimental.pallas import tpu as pltpu

_HIDDEN = 256


def _round_up(x, m):
    return ((x + m - 1) // m) * m


def _cdiv(a, b):
    return (a + b - 1) // b


def mlp_kernel(x_ref, w1_ref, b1_ref, w2_ref, b2_ref, o_ref, acc_ref):
    k = pl.program_id(1)

    @pl.when(k == 0)
    def _init():
        acc_ref[...] = jnp.zeros_like(acc_ref)

    # Partial x @ W1 for this K slab: bf16 MXU operands, f32 accumulation.
    # x arrives in its native dtype; the bf16 cast rides the VPU (no extra HBM pass).
    acc_ref[...] += jnp.dot(x_ref[...].astype(jnp.bfloat16), w1_ref[...],
                            preferred_element_type=jnp.float32)

    @pl.when(k == pl.num_programs(1) - 1)
    def _finalize():
        h = jnp.maximum(acc_ref[...] + b1_ref[...], 0.0)          # (TB, 256) f32
        out = jnp.dot(h.astype(w2_ref.dtype), w2_ref[...],
                      preferred_element_type=jnp.float32)
        o_ref[...] = (out + b2_ref[...]).astype(o_ref.dtype)


def _vmem_capacity_bytes():
    try:
        return int(pltpu.get_tpu_info().vmem_capacity_bytes)
    except Exception:
        return 64 << 20  # v7x per-TC floor -> safe assumption on every generation


def _footprint_bytes(tb, tk, c_pad, x_bpe):
    """Conservative VMEM footprint (double-buffer everything + scratch)."""
    h = _HIDDEN
    return (2 * tb * tk * x_bpe        # streamed x tiles
            + 2 * tk * h * 2           # W1 slab(s), bf16
            + 2 * h * c_pad * 2        # W2, bf16
            + 2 * (h + c_pad) * 4      # biases, f32
            + 2 * tb * c_pad * 4       # output tiles, f32
            + tb * h * 4)              # f32 accumulator scratch


def _select_tiling(B, F, c_pad, x_bpe, usable, tb_max=512):
    """Returns (TB, F_pad, TK, num_k_tiles)."""
    b16 = _round_up(max(B, 1), 16)
    tb = min(tb_max, b16)
    if B > 16 and _cdiv(b16, tb) < 2:
        # Guarantee >= 2 batch tiles so v7x's second TensorCore gets work.
        tb = max(16, _round_up(_cdiv(b16, 2), 16))

    f16 = _round_up(max(F, 1), 16)

    def fits(tb_, tk_):
        return _footprint_bytes(tb_, tk_, c_pad, x_bpe) <= usable

    # Preferred: W1 fully VMEM-resident (single K step, full-F blocks).
    if fits(tb, f16):
        return tb, f16, f16, 1
    while tb > 256 and not fits(tb, f16):      # keep TB >= 256 (HBM roofline)
        tb = _round_up(tb // 2, 16)
    if fits(tb, f16):
        return tb, f16, f16, 1

    # K-tile the contraction dim (TK multiple of 128 -> aligned lanes/sublanes).
    tk = 512
    while tk > 128 and not fits(tb, tk):
        tk //= 2
    while tb > 16 and not fits(tb, tk):
        tb = _round_up(tb // 2, 16)
    f_pad = _round_up(f16, tk)
    return tb, f_pad, tk, f_pad // tk


def mlp_forward(x, w1, b1, w2, b2, *, tb_max=512, out_dtype=jnp.float32):
    """x: (B, F); w1: (F, 256); b1: (1, 256); w2: (256, C); b2: (1, C)."""
    B, F = x.shape
    H = w1.shape[1]
    assert H == _HIDDEN
    C = w2.shape[1]

    # Lane-dense classifier dim: multiple of 128; 256-granular once C > 128 so
    # the second matmul feeds the full 256-wide v6e/v7x MXU (128 is fine on v5e).
    C_pad = _round_up(max(C, 128), 128)
    if C_pad > 128:
        C_pad = _round_up(C_pad, 256)

    cap = _vmem_capacity_bytes()
    usable = int(cap * 0.75)                       # leave compiler headroom
    x_bpe = jnp.dtype(x.dtype).itemsize
    TB, F_pad, TK, nk = _select_tiling(B, F, C_pad, x_bpe, usable, tb_max)
    B_pad = _round_up(_round_up(max(B, 1), 16), TB)

    # Zero-padding the contraction dim is numerically exact; padded batch rows
    # produce garbage that is sliced off below and never consumed.
    x_p = x
    if (B_pad, F_pad) != (B, F):
        x_p = jnp.pad(x, ((0, B_pad - B), (0, F_pad - F)))
    w1_b = (jnp.pad(w1, ((0, F_pad - F), (0, 0))) if F_pad != F else w1
            ).astype(jnp.bfloat16)
    w2_b = (jnp.pad(w2, ((0, 0), (0, C_pad - C))) if C_pad != C else w2
            ).astype(jnp.bfloat16)
    b1_f = b1.reshape(1, H).astype(jnp.float32)
    b2_2d = b2.reshape(1, C)
    b2_f = (jnp.pad(b2_2d, ((0, 0), (0, C_pad - C))) if C_pad != C else b2_2d
            ).astype(jnp.float32)
    # TODO(synk): on v7x, fp8 weight/x MXU operands (f32 accumulate) would halve
    # MXU time and weight/x DMA bytes for large-F compute-bound shapes.

    grid = (B_pad // TB, nk)
    footprint = _footprint_bytes(TB, TK, C_pad, x_bpe)
    vmem_limit = min(int(cap * 0.9), max(32 << 20, footprint + (4 << 20)))

    flops = 2 * B_pad * (F_pad * H + H * C_pad)
    bytes_accessed = (x_p.size * x_bpe + w1_b.size * 2 + w2_b.size * 2
                      + (b1_f.size + b2_f.size) * 4
                      + B_pad * C_pad * jnp.dtype(out_dtype).itemsize)

    def build_call(single_buffer_consts):
        kw = {"pipeline_mode": pl.Buffered(1)} if single_buffer_consts else {}
        w1_kw = kw if nk == 1 else {}          # W1 changes per K step when K-tiled
        in_specs = [
            pl.BlockSpec((TB, TK), lambda i, k: (i, k)),            # x, native dtype
            pl.BlockSpec((TK, H), lambda i, k: (k, 0), **w1_kw),    # W1 bf16
            pl.BlockSpec((1, H), lambda i, k: (0, 0), **kw),        # b1 f32
            pl.BlockSpec((H, C_pad), lambda i, k: (0, 0), **kw),    # W2 bf16
            pl.BlockSpec((1, C_pad), lambda i, k: (0, 0), **kw),    # b2 f32
        ]
        return pl.pallas_call(
            mlp_kernel,
            out_shape=jax.ShapeDtypeStruct((B_pad, C_pad), out_dtype),
            grid_spec=pltpu.PrefetchScalarGridSpec(
                num_scalar_prefetch=0,
                grid=grid,
                in_specs=in_specs,
                out_specs=pl.BlockSpec((TB, C_pad), lambda i, k: (i, 0)),
                scratch_shapes=[pltpu.VMEM((TB, H), jnp.float32)],
            ),
            compiler_params=pltpu.CompilerParams(
                dimension_semantics=("parallel", "arbitrary"),
                vmem_limit_bytes=vmem_limit,
            ),
            cost_estimate=pl.CostEstimate(
                flops=flops, transcendentals=0, bytes_accessed=bytes_accessed),
        )

    try:
        out = build_call(True)(x_p, w1_b, b1_f, w2_b, b2_f)
    except Exception:
        # Installed jax may not support per-BlockSpec pipeline_mode; fall back
        # to default double-buffering of the constant blocks.
        out = build_call(False)(x_p, w1_b, b1_f, w2_b, b2_f)

    return out[:B, :C]


def init_params(key, n_features, n_classes, hidden=_HIDDEN, dtype=jnp.float32):
    """Deterministic init mimicking PyTorch nn.Linear default (uniform +/- 1/sqrt(fan_in))."""
    k1, k2, k3, k4 = jax.random.split(key, 4)
    bound1 = 1.0 / (n_features ** 0.5)
    bound2 = 1.0 / (hidden ** 0.5)
    # stored transposed relative to PyTorch (out,in) -> here (in,out)
    w1 = jax.random.uniform(k1, (n_features, hidden), dtype, -bound1, bound1)
    b1 = jax.random.uniform(k2, (1, hidden), dtype, -bound1, bound1)
    w2 = jax.random.uniform(k3, (hidden, n_classes), dtype, -bound2, bound2)
    b2 = jax.random.uniform(k4, (1, n_classes), dtype, -bound2, bound2)
    return w1, b1, w2, b2


def _ref_forward_bf16(x, w1, b1, w2, b2):
    """Reference with the same bf16-operand / f32-accumulate recipe as the kernel."""
    h = jnp.dot(x.astype(jnp.bfloat16), w1.astype(jnp.bfloat16),
                preferred_element_type=jnp.float32)
    h = jnp.maximum(h + b1.astype(jnp.float32), 0.0)
    out = jnp.dot(h.astype(jnp.bfloat16), w2.astype(jnp.bfloat16),
                  preferred_element_type=jnp.float32)
    return out + b2.astype(jnp.float32)


if __name__ == "__main__":
    key = jax.random.PRNGKey(0)
    k_x, k_p = jax.random.split(key)

    batch = 8
    n_features = 32
    n_classes = 10

    x = jax.random.normal(k_x, (batch, n_features), jnp.float32)
    w1, b1, w2, b2 = init_params(k_p, n_features, n_classes)

    out = jax.block_until_ready(mlp_forward(x, w1, b1, w2, b2))
    assert out.shape == (batch, n_classes)

    # Tight check against a reference using the identical bf16/f32 recipe.
    ref_bf16 = _ref_forward_bf16(x, w1, b1, w2, b2)
    assert jnp.allclose(out, ref_bf16, atol=1e-3, rtol=1e-3)

    # Loose sanity check against the full-f32 PyTorch-equivalent forward.
    ref_f32 = jnp.maximum(x @ w1 + b1, 0.0) @ w2 + b2
    assert jnp.allclose(out, ref_f32, atol=1e-1, rtol=1e-1)

    print("KERNEL_OK")
</pallas_src>

<mosaic_0001>
module attributes {stable_mosaic.version = 11 : i64} {
  func.func @mlp_kernel(%arg0: i32, %arg1: i32, %arg2: memref<16x32xf32, #tpu.memory_space<vmem>>, %arg3: memref<32x256xbf16, #tpu.memory_space<vmem>>, %arg4: memref<1x256xf32, #tpu.memory_space<vmem>>, %arg5: memref<256x128xbf16, #tpu.memory_space<vmem>>, %arg6: memref<1x128xf32, #tpu.memory_space<vmem>>, %arg7: memref<16x128xf32, #tpu.memory_space<vmem>>, %arg8: memref<16x256xf32, #tpu.memory_space<vmem>>) attributes {dimension_semantics = [#tpu.dimension_semantics<parallel>, #tpu.dimension_semantics<arbitrary>], iteration_bounds = array<i64: 1, 1>, scalar_prefetch = 0 : i64, scratch_operands = 1 : i64, tpu.core_type = #tpu.core_type<tc>, window_params = [{transform_indices = @transform_0, window_bounds = array<i64: 16, 32>}, {pipeline_mode = #tpu.pipeline_mode<synchronous>, transform_indices = @transform_1, window_bounds = array<i64: 32, 256>}, {pipeline_mode = #tpu.pipeline_mode<synchronous>, transform_indices = @transform_2, window_bounds = array<i64: 1, 256>}, {pipeline_mode = #tpu.pipeline_mode<synchronous>, transform_indices = @transform_3, window_bounds = array<i64: 256, 128>}, {pipeline_mode = #tpu.pipeline_mode<synchronous>, transform_indices = @transform_4, window_bounds = array<i64: 1, 128>}, {transform_indices = @transform_5, window_bounds = array<i64: 16, 128>}]} {
    %c0_i32 = arith.constant 0 : i32
    %0 = arith.cmpi eq, %arg1, %c0_i32 : i32
    %1 = arith.extui %0 : i1 to i32
    %c0_i32_0 = arith.constant 0 : i32
    %2 = arith.cmpi ne, %1, %c0_i32_0 : i32
    scf.if %2 {
      %cst_10 = arith.constant 0.000000e+00 : f32
      %13 = vector.broadcast %cst_10 : f32 to vector<16x256xf32>
      %c0_11 = arith.constant 0 : index
      %c0_12 = arith.constant 0 : index
      %14 = vector.load %arg8[%c0_11, %c0_12] : memref<16x256xf32, #tpu.memory_space<vmem>>, vector<16x256xf32>
      tpu.vector_store %arg8[%c0_11, %c0_12], %13 {strides = array<i32>} : memref<16x256xf32, #tpu.memory_space<vmem>>, vector<16x256xf32>,
    } else {
    }
    %c0 = arith.constant 0 : index
    %c0_1 = arith.constant 0 : index
    %3 = vector.load %arg8[%c0, %c0_1] : memref<16x256xf32, #tpu.memory_space<vmem>>, vector<16x256xf32>
    %c0_2 = arith.constant 0 : index
    %c0_3 = arith.constant 0 : index
    %4 = vector.load %arg2[%c0_2, %c0_3] : memref<16x32xf32, #tpu.memory_space<vmem>>, vector<16x32xf32>
    %5 = arith.truncf %4 : vector<16x32xf32> to vector<16x32xbf16>
    %c0_4 = arith.constant 0 : index
    %c0_5 = arith.constant 0 : index
    %6 = vector.load %arg3[%c0_4, %c0_5] : memref<32x256xbf16, #tpu.memory_space<vmem>>, vector<32x256xbf16>
    %cst = arith.constant dense<0.000000e+00> : vector<16x256xf32>
    %7 = tpu.matmul %5, %6, %cst {dimension_numbers = #tpu.dot_dimension_numbers<[1], [0], [0], [1], [0, 0, 1, 1], [], []>} : vector<16x32xbf16>, vector<32x256xbf16>, vector<16x256xf32> -> vector<16x256xf32>
    %8 = arith.addf %3, %7 : vector<16x256xf32>
    %c0_6 = arith.constant 0 : index
    %c0_7 = arith.constant 0 : index
    %9 = vector.load %arg8[%c0_6, %c0_7] : memref<16x256xf32, #tpu.memory_space<vmem>>, vector<16x256xf32>
    tpu.vector_store %arg8[%c0_6, %c0_7], %8 {strides = array<i32>} : memref<16x256xf32, #tpu.memory_space<vmem>>, vector<16x256xf32>,
    %c0_i32_8 = arith.constant 0 : i32
    %10 = arith.cmpi eq, %arg1, %c0_i32_8 : i32
    %11 = arith.extui %10 : i1 to i32
    %c0_i32_9 = arith.constant 0 : i32
    %12 = arith.cmpi ne, %11, %c0_i32_9 : i32
    scf.if %12 {
      %c0_10 = arith.constant 0 : index
      %c0_11 = arith.constant 0 : index
      %13 = vector.load %arg8[%c0_10, %c0_11] : memref<16x256xf32, #tpu.memory_space<vmem>>, vector<16x256xf32>
      %c0_12 = arith.constant 0 : index
      %c0_13 = arith.constant 0 : index
      %14 = vector.load %arg4[%c0_12, %c0_13] : memref<1x256xf32, #tpu.memory_space<vmem>>, vector<1x256xf32>
      %15 = vector.broadcast %14 : vector<1x256xf32> to vector<16x256xf32>
      %16 = arith.addf %13, %15 : vector<16x256xf32>
      %cst_14 = arith.constant 0.000000e+00 : f32
      %17 = vector.broadcast %cst_14 : f32 to vector<16x256xf32>
      %18 = arith.maximumf %16, %17 : vector<16x256xf32>
      %19 = arith.truncf %18 : vector<16x256xf32> to vector<16x256xbf16>
      %c0_15 = arith.constant 0 : index
      %c0_16 = arith.constant 0 : index
      %20 = vector.load %arg5[%c0_15, %c0_16] : memref<256x128xbf16, #tpu.memory_space<vmem>>, vector<256x128xbf16>
      %cst_17 = arith.constant dense<0.000000e+00> : vector<16x128xf32>
      %21 = tpu.matmul %19, %20, %cst_17 {dimension_numbers = #tpu.dot_dimension_numbers<[1], [0], [0], [1], [0, 0, 1, 1], [], []>} : vector<16x256xbf16>, vector<256x128xbf16>, vector<16x128xf32> -> vector<16x128xf32>
      %c0_18 = arith.constant 0 : index
      %c0_19 = arith.constant 0 : index
      %22 = vector.load %arg6[%c0_18, %c0_19] : memref<1x128xf32, #tpu.memory_space<vmem>>, vector<1x128xf32>
      %23 = vector.broadcast %22 : vector<1x128xf32> to vector<16x128xf32>
      %24 = arith.addf %21, %23 : vector<16x128xf32>
      %c0_20 = arith.constant 0 : index
      %c0_21 = arith.constant 0 : index
      %25 = vector.load %arg7[%c0_20, %c0_21] : memref<16x128xf32, #tpu.memory_space<vmem>>, vector<16x128xf32>
      tpu.vector_store %arg7[%c0_20, %c0_21], %24 {strides = array<i32>} : memref<16x128xf32, #tpu.memory_space<vmem>>, vector<16x128xf32>,
    } else {
    }
    return
  }
  func.func @transform_0(%arg0: i32, %arg1: i32) -> (i32, i32) {
    %c0_i32 = arith.constant 0 : i32
    return %arg0, %arg1 : i32, i32
  }
  func.func @transform_1(%arg0: i32, %arg1: i32) -> (i32, i32) {
    %c0_i32 = arith.constant 0 : i32
    %c0_i32_0 = arith.constant 0 : i32
    return %arg1, %c0_i32 : i32, i32
  }
  func.func @transform_2(%arg0: i32, %arg1: i32) -> (i32, i32) {
    %c0_i32 = arith.constant 0 : i32
    %c0_i32_0 = arith.constant 0 : i32
    %c0_i32_1 = arith.constant 0 : i32
    return %c0_i32, %c0_i32_0 : i32, i32
  }
  func.func @transform_3(%arg0: i32, %arg1: i32) -> (i32, i32) {
    %c0_i32 = arith.constant 0 : i32
    %c0_i32_0 = arith.constant 0 : i32
    %c0_i32_1 = arith.constant 0 : i32
    return %c0_i32, %c0_i32_0 : i32, i32
  }
  func.func @transform_4(%arg0: i32, %arg1: i32) -> (i32, i32) {
    %c0_i32 = arith.constant 0 : i32
    %c0_i32_0 = arith.constant 0 : i32
    %c0_i32_1 = arith.constant 0 : i32
    return %c0_i32, %c0_i32_0 : i32, i32
  }
  func.func @transform_5(%arg0: i32, %arg1: i32) -> (i32, i32) {
    %c0_i32 = arith.constant 0 : i32
    %c0_i32_0 = arith.constant 0 : i32
    return %arg0, %c0_i32 : i32, i32
  }
}

module attributes {stable_mosaic.version = 11 : i64} {
  func.func @mlp_kernel(%arg0: i32, %arg1: i32, %arg2: memref<16x32xf32, #tpu.memory_space<vmem>>, %arg3: memref<32x256xbf16, #tpu.memory_space<vmem>>, %arg4: memref<1x256xf32, #tpu.memory_space<vmem>>, %arg5: memref<256x128xbf16, #tpu.memory_space<vmem>>, %arg6: memref<1x128xf32, #tpu.memory_space<vmem>>, %arg7: memref<16x128xf32, #tpu.memory_space<vmem>>, %arg8: memref<16x256xf32, #tpu.memory_space<vmem>>) attributes {dimension_semantics = [#tpu.dimension_semantics<parallel>, #tpu.dimension_semantics<arbitrary>], iteration_bounds = array<i64: 1, 1>, scalar_prefetch = 0 : i64, scratch_operands = 1 : i64, tpu.core_type = #tpu.core_type<tc>, window_params = [{transform_indices = @transform_0, window_bounds = array<i64: 16, 32>}, {transform_indices = @transform_1, window_bounds = array<i64: 32, 256>}, {pipeline_mode = #tpu.pipeline_mode<synchronous>, transform_indices = @transform_2, window_bounds = array<i64: 1, 256>}, {pipeline_mode = #tpu.pipeline_mode<synchronous>, transform_indices = @transform_3, window_bounds = array<i64: 256, 128>}, {pipeline_mode = #tpu.pipeline_mode<synchronous>, transform_indices = @transform_4, window_bounds = array<i64: 1, 128>}, {transform_indices = @transform_5, window_bounds = array<i64: 16, 128>}]} {
    %c0_i32 = arith.constant 0 : i32
    %0 = arith.cmpi eq, %arg1, %c0_i32 : i32
    %1 = arith.extui %0 : i1 to i32
    %c0_i32_0 = arith.constant 0 : i32
    %2 = arith.cmpi ne, %1, %c0_i32_0 : i32
    scf.if %2 {
      %cst_10 = arith.constant 0.000000e+00 : f32
      %13 = vector.broadcast %cst_10 : f32 to vector<16x256xf32>
      %c0_11 = arith.constant 0 : index
      %c0_12 = arith.constant 0 : index
      %14 = vector.load %arg8[%c0_11, %c0_12] : memref<16x256xf32, #tpu.memory_space<vmem>>, vector<16x256xf32>
      tpu.vector_store %arg8[%c0_11, %c0_12], %13 {strides = array<i32>} : memref<16x256xf32, #tpu.memory_space<vmem>>, vector<16x256xf32>,
    } else {
    }
    %c0 = arith.constant 0 : index
    %c0_1 = arith.constant 0 : index
    %3 = vector.load %arg8[%c0, %c0_1] : memref<16x256xf32, #tpu.memory_space<vmem>>, vector<16x256xf32>
    %c0_2 = arith.constant 0 : index
    %c0_3 = arith.constant 0 : index
    %4 = vector.load %arg2[%c0_2, %c0_3] : memref<16x32xf32, #tpu.memory_space<vmem>>, vector<16x32xf32>
    %5 = arith.truncf %4 : vector<16x32xf32> to vector<16x32xbf16>
    %c0_4 = arith.constant 0 : index
    %c0_5 = arith.constant 0 : index
    %6 = vector.load %arg3[%c0_4, %c0_5] : memref<32x256xbf16, #tpu.memory_space<vmem>>, vector<32x256xbf16>
    %cst = arith.constant dense<0.000000e+00> : vector<16x256xf32>
    %7 = tpu.matmul %5, %6, %cst {dimension_numbers = #tpu.dot_dimension_numbers<[1], [0], [0], [1], [0, 0, 1, 1], [], []>} : vector<16x32xbf16>, vector<32x256xbf16>, vector<16x256xf32> -> vector<16x256xf32>
    %8 = arith.addf %3, %7 : vector<16x256xf32>
    %c0_6 = arith.constant 0 : index
    %c0_7 = arith.constant 0 : index
    %9 = vector.load %arg8[%c0_6, %c0_7] : memref<16x256xf32, #tpu.memory_space<vmem>>, vector<16x256xf32>
    tpu.vector_store %arg8[%c0_6, %c0_7], %8 {strides = array<i32>} : memref<16x256xf32, #tpu.memory_space<vmem>>, vector<16x256xf32>,
    %c0_i32_8 = arith.constant 0 : i32
    %10 = arith.cmpi eq, %arg1, %c0_i32_8 : i32
    %11 = arith.extui %10 : i1 to i32
    %c0_i32_9 = arith.constant 0 : i32
    %12 = arith.cmpi ne, %11, %c0_i32_9 : i32
    scf.if %12 {
      %c0_10 = arith.constant 0 : index
      %c0_11 = arith.constant 0 : index
      %13 = vector.load %arg8[%c0_10, %c0_11] : memref<16x256xf32, #tpu.memory_space<vmem>>, vector<16x256xf32>
      %c0_12 = arith.constant 0 : index
      %c0_13 = arith.constant 0 : index
      %14 = vector.load %arg4[%c0_12, %c0_13] : memref<1x256xf32, #tpu.memory_space<vmem>>, vector<1x256xf32>
      %15 = vector.broadcast %14 : vector<1x256xf32> to vector<16x256xf32>
      %16 = arith.addf %13, %15 : vector<16x256xf32>
      %cst_14 = arith.constant 0.000000e+00 : f32
      %17 = vector.broadcast %cst_14 : f32 to vector<16x256xf32>
      %18 = arith.maximumf %16, %17 : vector<16x256xf32>
      %19 = arith.truncf %18 : vector<16x256xf32> to vector<16x256xbf16>
      %c0_15 = arith.constant 0 : index
      %c0_16 = arith.constant 0 : index
      %20 = vector.load %arg5[%c0_15, %c0_16] : memref<256x128xbf16, #tpu.memory_space<vmem>>, vector<256x128xbf16>
      %cst_17 = arith.constant dense<0.000000e+00> : vector<16x128xf32>
      %21 = tpu.matmul %19, %20, %cst_17 {dimension_numbers = #tpu.dot_dimension_numbers<[1], [0], [0], [1], [0, 0, 1, 1], [], []>} : vector<16x256xbf16>, vector<256x128xbf16>, vector<16x128xf32> -> vector<16x128xf32>
      %c0_18 = arith.constant 0 : index
      %c0_19 = arith.constant 0 : index
      %22 = vector.load %arg6[%c0_18, %c0_19] : memref<1x128xf32, #tpu.memory_space<vmem>>, vector<1x128xf32>
      %23 = vector.broadcast %22 : vector<1x128xf32> to vector<16x128xf32>
      %24 = arith.addf %21, %23 : vector<16x128xf32>
      %c0_20 = arith.constant 0 : index
      %c0_21 = arith.constant 0 : index
      %25 = vector.load %arg7[%c0_20, %c0_21] : memref<16x128xf32, #tpu.memory_space<vmem>>, vector<16x128xf32>
      tpu.vector_store %arg7[%c0_20, %c0_21], %24 {strides = array<i32>} : memref<16x128xf32, #tpu.memory_space<vmem>>, vector<16x128xf32>,
    } else {
    }
    return
  }
  func.func @transform_0(%arg0: i32, %arg1: i32) -> (i32, i32) {
    %c0_i32 = arith.constant 0 : i32
    return %arg0, %arg1 : i32, i32
  }
  func.func @transform_1(%arg0: i32, %arg1: i32) -> (i32, i32) {
    %c0_i32 = arith.constant 0 : i32
    %c0_i32_0 = arith.constant 0 : i32
    return %arg1, %c0_i32 : i32, i32
  }
  func.func @transform_2(%arg0: i32, %arg1: i32) -> (i32, i32) {
    %c0_i32 = arith.constant 0 : i32
    %c0_i32_0 = arith.constant 0 : i32
    %c0_i32_1 = arith.constant 0 : i32
    return %c0_i32, %c0_i32_0 : i32, i32
  }
  func.func @transform_3(%arg0: i32, %arg1: i32) -> (i32, i32) {
    %c0_i32 = arith.constant 0 : i32
    %c0_i32_0 = arith.constant 0 : i32
    %c0_i32_1 = arith.constant 0 : i32
    return %c0_i32, %c0_i32_0 : i32, i32
  }
  func.func @transform_4(%arg0: i32, %arg1: i32) -> (i32, i32) {
    %c0_i32 = arith.constant 0 : i32
    %c0_i32_0 = arith.constant 0 : i32
    %c0_i32_1 = arith.constant 0 : i32
    return %c0_i32, %c0_i32_0 : i32, i32
  }
  func.func @transform_5(%arg0: i32, %arg1: i32) -> (i32, i32) {
    %c0_i32 = arith.constant 0 : i32
    %c0_i32_0 = arith.constant 0 : i32
    return %arg0, %c0_i32 : i32, i32
  }
}

</mosaic_0001>

<llo_original>
// kernel: tpu_custom_call.1
$region0: #{tpu_custom_call.1}
  #allocation0 [shape = 'u32[]', space=smem, size = 0x4, offset = 0x4, fixed_abs, tag = 'smem constant byte address 0x4 - core index']
  #allocation1 [shape = 'u32[144,128]{1,0:T(1,128)}', space=vmem, size = 0x12000, scoped, tag = 'internal scratch']
  #allocation2 [shape = 'f32[16,256]{1,0:T(8,128)}', space=vmem, size = 0x4000, scoped, tag = 'scratch operand']
  %s0 = inlined_call_operand.hbm [shape: f32[16,32], index: 0, kind: input, shape index: {}]
  %s1 = inlined_call_operand.hbm [shape: bf16[32,256], index: 1, kind: input, shape index: {}]
  %s2 = inlined_call_operand.vmem [shape: f32[1,256], index: 2, kind: input, shape index: {}]
  %s3 = inlined_call_operand.hbm [shape: bf16[256,128], index: 3, kind: input, shape index: {}]
  %s4 = inlined_call_operand.vmem [shape: f32[1,128], index: 4, kind: input, shape index: {}]
  %s5 = inlined_call_operand.hbm [shape: f32[16,128], index: 5, kind: output, shape index: {}]
  %s6 = sld [smem:[#allocation0]]
  $region50: #{tpu_custom_call.1} parent=0
    _
  %s8 = ssub.s32 1, %s6
  %s9 = scalar_select 0, %s8, %s6
  $region1: #{tpu_custom_call.1} parent=0
    #allocation3 [shape = 'u8[8192]{0}', space=vmem, size = 0x2000, scoped, tag = 'input window, operand 0, single buffered']
    #allocation4 [shape = 's32[1]{0}', space=sflag, size = 0x4, scoped, tag = 'scoped memory for tpu_custom_call.1']
    #allocation5 [shape = 's32[1]{0}', space=sflag, size = 0x4, scoped, tag = 'scoped memory for tpu_custom_call.1']
    #allocation6 [shape = 'u8[16384]{0}', space=vmem, size = 0x4000, scoped, tag = 'input window, operand 1, single buffered']
    #allocation7 [shape = 's32[1]{0}', space=sflag, size = 0x4, scoped, tag = 'scoped memory for tpu_custom_call.1']
    #allocation8 [shape = 'u8[65536]{0}', space=vmem, size = 0x10000, scoped, tag = 'input window, operand 3, single buffered']
    #allocation9 [shape = 'u8[8192]{0}', space=vmem, size = 0x2000, scoped, tag = 'output window, operand 0, single buffered']
    %10 = vsyncpa [#allocation4], 0
    %11 = vsyncpa [#allocation7], 0
    %12 = vsyncpa [#allocation5], 0
    // Predicated region
    $region2: #{tpu_custom_call.1} parent=1 // pred_check
      _
    $region3: #{tpu_custom_call.1} parent=1 // pred_check_branch
      %14 = sbr.rel (0) target = $region5
    $region4: #{tpu_custom_call.1} parent=1 // pred_region
      %s16 = ssub.s32 256, 256
      %17 = vsyncadd [#allocation4], %s16
      %s18 = sshll.u32 [#allocation3], 4
      %s19 = int_to_ptr.vmem [resolvable:$true] %s18
      %24 = dma.hbm_to_vmem [thread:$0]  %s0, 256, %s19, [#allocation4], 128, 128, 8
    $region5: #{tpu_custom_call.1} parent=1 // pred_fallthru
      _
    // Predicated region
    $region6: #{tpu_custom_call.1} parent=1 // pred_check
      _
    $region7: #{tpu_custom_call.1} parent=1 // pred_check_branch
      %26 = sbr.rel (0) target = $region9
    $region8: #{tpu_custom_call.1} parent=1 // pred_region
      %s28 = ssub.s32 512, 512
      %29 = vsyncadd [#allocation7], %s28
      %s30 = sshll.u32 [#allocation6], 4
      %s31 = int_to_ptr.vmem [resolvable:$true] %s30
      %36 = dma.hbm_to_vmem [thread:$0]  %s1, 512, %s31, [#allocation7], 128, 128, 8
    $region9: #{tpu_custom_call.1} parent=1 // pred_fallthru
      _
    // Predicated region
    $region10: #{tpu_custom_call.1} parent=1 // pred_check
      _
    $region11: #{tpu_custom_call.1} parent=1 // pred_check_branch
      %38 = sbr.rel (0) target = $region13
    $region12: #{tpu_custom_call.1} parent=1 // pred_region
      _
    $region13: #{tpu_custom_call.1} parent=1 // pred_fallthru
      _
    // Predicated region
    $region14: #{tpu_custom_call.1} parent=1 // pred_check
      _
    $region15: #{tpu_custom_call.1} parent=1 // pred_check_branch
      %40 = sbr.rel (0) target = $region17
    $region16: #{tpu_custom_call.1} parent=1 // pred_region
      %s42 = ssub.s32 2048, 2048
      %43 = vsyncadd [#allocation7], %s42
      %s44 = sshll.u32 [#allocation8], 4
      %s45 = int_to_ptr.vmem [resolvable:$true] %s44
      %50 = dma.hbm_to_vmem [thread:$0]  %s3, 2048, %s45, [#allocation7], 64, 64, 4
    $region17: #{tpu_custom_call.1} parent=1 // pred_fallthru
      _
    // Predicated region
    $region18: #{tpu_custom_call.1} parent=1 // pred_check
      _
    $region19: #{tpu_custom_call.1} parent=1 // pred_check_branch
      %52 = sbr.rel (0) target = $region21
    $region20: #{tpu_custom_call.1} parent=1 // pred_region
      _
    $region21: #{tpu_custom_call.1} parent=1 // pred_fallthru
      _
    // Predicated region
    $region22: #{tpu_custom_call.1} parent=1 // pred_check
      _
    $region23: #{tpu_custom_call.1} parent=1 // pred_check_branch
      %54 = sbr.rel (0) target = $region25
    $region24: #{tpu_custom_call.1} parent=1 // pred_region
      %55 = dma.done [#allocation4], 256
    $region25: #{tpu_custom_call.1} parent=1 // pred_fallthru
      _
    // Predicated region
    $region26: #{tpu_custom_call.1} parent=1 // pred_check
      _
    $region27: #{tpu_custom_call.1} parent=1 // pred_check_branch
      %57 = sbr.rel (0) target = $region29
    $region28: #{tpu_custom_call.1} parent=1 // pred_region
      %58 = dma.done [#allocation7], 512
    $region29: #{tpu_custom_call.1} parent=1 // pred_fallthru
      _
    // Predicated region
    $region30: #{tpu_custom_call.1} parent=1 // pred_check
      _
    $region31: #{tpu_custom_call.1} parent=1 // pred_check_branch
      %60 = sbr.rel (0) target = $region33
    $region32: #{tpu_custom_call.1} parent=1 // pred_region
      %61 = dma.done [#allocation7], 2048
    $region33: #{tpu_custom_call.1} parent=1 // pred_fallthru
      _
    %p63 = scmp.eq.s32.totalorder 0, 0
    // Predicated region
    $region34: #{tpu_custom_call.1} parent=1 // pred_check
      %p64 = pneg %p63
    $region35: #{tpu_custom_call.1} parent=1 // pred_check_branch
      %66 = sbr.rel (%p64) target = $region37
    $region36: #{tpu_custom_call.1} parent=1 // pred_region
      %67 = vst [vmem:[#allocation2] sm:$0xff] 0.0
      %68 = vst [vmem:[#allocation2 + $0x8] sm:$0xff] 0.0
      %69 = vst [vmem:[#allocation2 + $0x10] sm:$0xff] 0.0
      %70 = vst [vmem:[#allocation2 + $0x18] sm:$0xff] 0.0
    $region37: #{tpu_custom_call.1} parent=1 // pred_fallthru
      _
    %v71 = vld [vmem:[#allocation2] sm:$0xff]
    %v72 = vld [vmem:[#allocation2 + $0x8] sm:$0xff]
    %v73 = vld [vmem:[#allocation2 + $0x10] sm:$0xff]
    %v74 = vld [vmem:[#allocation2 + $0x18] sm:$0xff]
    %v75 = vld [vmem:[#allocation3] sm:$0xff]
    %v76 = vld [vmem:[#allocation3 + $0x8] sm:$0xff]
    %v77 = vpack.c.bf16 %v76, %v75
    %v78 = vld [vmem:[#allocation6] sm:$0xff]
    %v79 = vld [vmem:[#allocation6 + $0x8] sm:$0xff]
    %v80 = vld [vmem:[#allocation6 + $0x10] sm:$0xff]
    %v81 = vld [vmem:[#allocation6 + $0x18] sm:$0xff]
    %v86 = vunpack.c.l.b16 %v78
    %v87 = vunpack.c.h.b16 %v78
    %v88 = vunpack.c.l.b16 %v79
    %v89 = vunpack.c.h.b16 %v79
    %v90 = vunpack.c.l.b16 %v80
    %v91 = vunpack.c.h.b16 %v80
    %v92 = vunpack.c.l.b16 %v81
    %v93 = vunpack.c.h.b16 %v81
    %v94 = vpack.c.b16 %v88, %v86
    %v95 = vpack.c.b16 %v89, %v87
    %v96 = vpack.c.b16 %v92, %v90
    %v97 = vpack.c.b16 %v93, %v91
    %vm102 = vcmask 261120
    %v104 = vsel %vm102, %v77, 0
    %106 = vmatprep.subr.bf16.mxu0 %v95
    %107 = vmatpush1.bf16.msra.mxu0 %v94
    %108 = vmatprep.subr.bf16.mxu0 %v97
    %109 = vmatpush1.bf16.msra.mxu0 %v96
    %110 = vmatprep.subr.bf16.mxu0 0
    %111 = vmatpush1.bf16.msra.mxu0 0
    %112 = vmatprep.subr.bf16.mxu0 0
    %113 = vmatpush1.bf16.msra.mxu0 0
    %114 = vmatprep.subr.bf16.mxu0 0
    %115 = vmatpush1.bf16.msra.mxu0 0
    %116 = vmatprep.subr.bf16.mxu0 0
    %117 = vmatpush1.bf16.msra.mxu0 0
    %118 = vmatprep.subr.bf16.mxu0 0
    %119 = vmatpush1.bf16.msra.mxu0 0
    %120 = vmatprep.subr.bf16.mxu0 0
    %121 = vmatpush1.bf16.msra.mxu0 0
    %122 = vmatprep.subr.bf16.mxu0 0
    %123 = vmatpush1.bf16.msra.mxu0 0
    %124 = vmatprep.subr.bf16.mxu0 0
    %125 = vmatpush1.bf16.msra.mxu0 0
    %126 = vmatprep.subr.bf16.mxu0 0
    %127 = vmatpush1.bf16.msra.mxu0 0
    %128 = vmatprep.subr.bf16.mxu0 0
    %129 = vmatpush1.bf16.msra.mxu0 0
    %130 = vmatprep.subr.bf16.mxu0 0
    %131 = vmatpush1.bf16.msra.mxu0 0
    %132 = vmatprep.subr.bf16.mxu0 0
    %133 = vmatpush1.bf16.msra.mxu0 0
    %134 = vmatprep.subr.bf16.mxu0 0
    %135 = vmatpush1.bf16.msra.mxu0 0
    %136 = vmatprep.subr.bf16.mxu0 0
    %137 = vmatpush1.bf16.msra.mxu0 0
    %138 = vmatprep.mubr.bf16.mxu0 0
    %139 = vmatmul.mubr.bf16.gmra.mrb[0].mxu0 %v104
    %v140 = vpop.f32.mrb[0].mxu0
    %v141 = vadd.f32 0.0, %v140
    %v142 = vpop.f32.mrb[0].mxu0
    %v143 = vadd.f32 0.0, %v142
    %v144 = vpop.f32.mrb[0].mxu0
    %v145 = vadd.f32 0.0, %v144
    %v146 = vpop.f32.mrb[0].mxu0
    %v147 = vadd.f32 0.0, %v146
    %148 = vdwg.mxu0
    %v149 = vadd.f32 %v71, %v141
    %v150 = vadd.f32 %v72, %v143
    %v151 = vadd.f32 %v73, %v145
    %v152 = vadd.f32 %v74, %v147
    %153 = vst [vmem:[#allocation2] sm:$0xff] %v149
    %154 = vst [vmem:[#allocation2 + $0x8] sm:$0xff] %v150
    %155 = vst [vmem:[#allocation2 + $0x10] sm:$0xff] %v151
    %156 = vst [vmem:[#allocation2 + $0x18] sm:$0xff] %v152
    // Predicated region
    $region38: #{tpu_custom_call.1} parent=1 // pred_check
      %p157 = pneg %p63
    $region39: #{tpu_custom_call.1} parent=1 // pred_check_branch
      %159 = sbr.rel (%p157) target = $region41
    $region40: #{tpu_custom_call.1} parent=1 // pred_region
      %v160 = vld [vmem:[#allocation2] sm:$0xff]
      %v161 = vld [vmem:[#allocation2 + $0x8] sm:$0xff]
      %v162 = vld [vmem:[#allocation2 + $0x10] sm:$0xff]
      %v163 = vld [vmem:[#allocation2 + $0x18] sm:$0xff]
      %v164 = vld [vmem:[%s2] sm:$0x3]
      %v166 = vlaneseq
      %v167 = vshrl.u32 %v166, 7
      %v168 = vsub.s32 0, %v167
      %v169 = vrot.slane %v164, %v168
      %v170 = vlaneseq
      %v171 = vshrl.u32 %v170, 7
      %v172 = vsub.s32 1, %v171
      %v173 = vrot.slane %v164, %v172
      %v176 = vadd.f32 %v160, %v169
      %v177 = vadd.f32 %v161, %v173
      %v178 = vadd.f32 %v162, %v169
      %v179 = vadd.f32 %v163, %v173
      %v180 = vmax.f32 %v176, 0.0
      %v181 = vmax.f32 %v177, 0.0
      %v182 = vmax.f32 %v178, 0.0
      %v183 = vmax.f32 %v179, 0.0
      %v184 = vpack.c.bf16 %v182, %v180
      %v185 = vpack.c.bf16 %v183, %v181
      %v186 = vld [vmem:[#allocation8] sm:$0xf]
      %v187 = vld [vmem:[#allocation8 + $0x4] sm:$0xf]
      %v188 = vld [vmem:[#allocation8 + $0x8] sm:$0xf]
      %v189 = vld [vmem:[#allocation8 + $0xc] sm:$0xf]
      %v190 = vld [vmem:[#allocation8 + $0x10] sm:$0xf]
      %v191 = vld [vmem:[#allocation8 + $0x14] sm:$0xf]
      %v192 = vld [vmem:[#allocation8 + $0x18] sm:$0xf]
      %v193 = vld [vmem:[#allocation8 + $0x1c] sm:$0xf]
      %v194 = vld [vmem:[#allocation8 + $0x20] sm:$0xf]
      %v195 = vld [vmem:[#allocation8 + $0x24] sm:$0xf]
      %v196 = vld [vmem:[#allocation8 + $0x28] sm:$0xf]
      %v197 = vld [vmem:[#allocation8 + $0x2c] sm:$0xf]
      %v198 = vld [vmem:[#allocation8 + $0x30] sm:$0xf]
      %v199 = vld [vmem:[#allocation8 + $0x34] sm:$0xf]
      %v200 = vld [vmem:[#allocation8 + $0x38] sm:$0xf]
      %v201 = vld [vmem:[#allocation8 + $0x3c] sm:$0xf]
      %v202 = vld [vmem:[#allocation8 + $0x40] sm:$0xf]
      %v203 = vld [vmem:[#allocation8 + $0x44] sm:$0xf]
      %v204 = vld [vmem:[#allocation8 + $0x48] sm:$0xf]
      %v205 = vld [vmem:[#allocation8 + $0x4c] sm:$0xf]
      %v206 = vld [vmem:[#allocation8 + $0x50] sm:$0xf]
      %v207 = vld [vmem:[#allocation8 + $0x54] sm:$0xf]
      %v208 = vld [vmem:[#allocation8 + $0x58] sm:$0xf]
      %v209 = vld [vmem:[#allocation8 + $0x5c] sm:$0xf]
      %v210 = vld [vmem:[#allocation8 + $0x60] sm:$0xf]
      %v211 = vld [vmem:[#allocation8 + $0x64] sm:$0xf]
      %v212 = vld [vmem:[#allocation8 + $0x68] sm:$0xf]
      %v213 = vld [vmem:[#allocation8 + $0x6c] sm:$0xf]
      %v214 = vld [vmem:[#allocation8 + $0x70] sm:$0xf]
      %v215 = vld [vmem:[#allocation8 + $0x74] sm:$0xf]
      %v216 = vld [vmem:[#allocation8 + $0x78] sm:$0xf]
      %v217 = vld [vmem:[#allocation8 + $0x7c] sm:$0xf]
      %v218 = vld [vmem:[%s4] sm:$0x1]
      %v220 = vlaneseq
      %v221 = vshrl.u32 %v220, 7
      %v222 = vsub.s32 0, %v221
      %v223 = vrot.slane %v218, %v222
      %v257 = vunpack.c.l.b16 %v186
      %v258 = vunpack.c.l.b16 %v187
      %v259 = vunpack.c.l.b16 %v188
      %v260 = vunpack.c.l.b16 %v189
      %v261 = vunpack.c.l.b16 %v190
      %v262 = vunpack.c.l.b16 %v191
      %v263 = vunpack.c.l.b16 %v192
      %v264 = vunpack.c.l.b16 %v193
      %v265 = vunpack.c.l.b16 %v194
      %v266 = vunpack.c.l.b16 %v195
      %v267 = vunpack.c.l.b16 %v196
      %v268 = vunpack.c.l.b16 %v197
      %v269 = vunpack.c.l.b16 %v198
      %v270 = vunpack.c.l.b16 %v199
      %v271 = vunpack.c.l.b16 %v200
      %v272 = vunpack.c.l.b16 %v201
      %v273 = vunpack.c.l.b16 %v202
      %v274 = vunpack.c.l.b16 %v203
      %v275 = vunpack.c.l.b16 %v204
      %v276 = vunpack.c.l.b16 %v205
      %v277 = vunpack.c.l.b16 %v206
      %v278 = vunpack.c.l.b16 %v207
      %v279 = vunpack.c.l.b16 %v208
      %v280 = vunpack.c.l.b16 %v209
      %v281 = vunpack.c.l.b16 %v210
      %v282 = vunpack.c.l.b16 %v211
      %v283 = vunpack.c.l.b16 %v212
      %v284 = vunpack.c.l.b16 %v213
      %v285 = vunpack.c.l.b16 %v214
      %v286 = vunpack.c.l.b16 %v215
      %v287 = vunpack.c.l.b16 %v216
      %v288 = vunpack.c.l.b16 %v217
      %v289 = vpack.c.b16 %v258, %v257
      %v290 = vpack.c.b16 %v260, %v259
      %v291 = vpack.c.b16 %v262, %v261
      %v292 = vpack.c.b16 %v264, %v263
      %v293 = vpack.c.b16 %v266, %v265
      %v294 = vpack.c.b16 %v268, %v267
      %v295 = vpack.c.b16 %v270, %v269
      %v296 = vpack.c.b16 %v272, %v271
      %v297 = vpack.c.b16 %v274, %v273
      %v298 = vpack.c.b16 %v276, %v275
      %v299 = vpack.c.b16 %v278, %v277
      %v300 = vpack.c.b16 %v280, %v279
      %v301 = vpack.c.b16 %v282, %v281
      %v302 = vpack.c.b16 %v284, %v283
      %v303 = vpack.c.b16 %v286, %v285
      %v304 = vpack.c.b16 %v288, %v287
      %321 = vmatprep.subr.bf16.mxu0 0
      %322 = vmatpush1.bf16.msra.mxu0 %v289
      %323 = vmatprep.subr.bf16.mxu0 0
      %324 = vmatpush1.bf16.msra.mxu0 %v290
      %325 = vmatprep.subr.bf16.mxu0 0
      %326 = vmatpush1.bf16.msra.mxu0 %v291
      %327 = vmatprep.subr.bf16.mxu0 0
      %328 = vmatpush1.bf16.msra.mxu0 %v292
      %329 = vmatprep.subr.bf16.mxu0 0
      %330 = vmatpush1.bf16.msra.mxu0 %v293
      %331 = vmatprep.subr.bf16.mxu0 0
      %332 = vmatpush1.bf16.msra.mxu0 %v294
      %333 = vmatprep.subr.bf16.mxu0 0
      %334 = vmatpush1.bf16.msra.mxu0 %v295
      %335 = vmatprep.subr.bf16.mxu0 0
      %336 = vmatpush1.bf16.msra.mxu0 %v296
      %337 = vmatprep.subr.bf16.mxu0 0
      %338 = vmatpush1.bf16.msra.mxu0 %v297
      %339 = vmatprep.subr.bf16.mxu0 0
      %340 = vmatpush1.bf16.msra.mxu0 %v298
      %341 = vmatprep.subr.bf16.mxu0 0
      %342 = vmatpush1.bf16.msra.mxu0 %v299
      %343 = vmatprep.subr.bf16.mxu0 0
      %344 = vmatpush1.bf16.msra.mxu0 %v300
      %345 = vmatprep.subr.bf16.mxu0 0
      %346 = vmatpush1.bf16.msra.mxu0 %v301
      %347 = vmatprep.subr.bf16.mxu0 0
      %348 = vmatpush1.bf16.msra.mxu0 %v302
      %349 = vmatprep.subr.bf16.mxu0 0
      %350 = vmatpush1.bf16.msra.mxu0 %v303
      %351 = vmatprep.subr.bf16.mxu0 0
      %352 = vmatpush1.bf16.msra.mxu0 %v304
      %353 = vmatprep.mubr.bf16.mxu0 %v185
      %354 = vmatmul.mubr.bf16.gmra.mrb[0].mxu0 %v184
      %v355 = vpop.f32.mrb[0].mxu0
      %v356 = vadd.f32 %v223, %v355
      %v357 = vpop.f32.mrb[0].mxu0
      %v358 = vpop.f32.mrb[0].mxu0
      %v359 = vadd.f32 %v223, %v358
      %v360 = vpop.f32.mrb[0].mxu0
      %361 = vdwg.mxu0
      %362 = vst [vmem:[#allocation9] sm:$0xff] %v356
      %363 = vst [vmem:[#allocation9 + $0x8] sm:$0xff] %v359
    $region41: #{tpu_custom_call.1} parent=1 // pred_fallthru
      _
    // Predicated region
    $region42: #{tpu_custom_call.1} parent=1 // pred_check
      _
    $region43: #{tpu_custom_call.1} parent=1 // pred_check_branch
      %365 = sbr.rel (0) target = $region45
    $region44: #{tpu_custom_call.1} parent=1 // pred_region
      %s367 = ssub.s32 256, 256
      %368 = vsyncadd [#allocation5], %s367
      %s369 = sshll.u32 [#allocation9], 4
      %s370 = int_to_ptr.vmem [resolvable:$true] %s369
      %375 = dma.vmem_to_hbm [thread:$0]  %s370, 256, %s5, [#allocation5], 128, 128, 8
    $region45: #{tpu_custom_call.1} parent=1 // pred_fallthru
      _
    // Predicated region
    $region46: #{tpu_custom_call.1} parent=1 // pred_check
      _
    $region47: #{tpu_custom_call.1} parent=1 // pred_check_branch
      %377 = sbr.rel (0) target = $region49
    $region48: #{tpu_custom_call.1} parent=1 // pred_region
      %378 = dma.done [#allocation5], 256
    $region49: #{tpu_custom_call.1} parent=1 // pred_fallthru
      _
    %379 = vsyncpa [#allocation4], 1
    %380 = vsyncpa [#allocation7], 1
    %381 = vsyncpa [#allocation5], 1

// kernel: tpu_custom_call.1
$region0: #{tpu_custom_call.1}
  #allocation0 [shape = 'u32[]', space=smem, size = 0x4, offset = 0x4, fixed_abs, tag = 'smem constant byte address 0x4 - core index']
  #allocation1 [shape = 'u32[144,128]{1,0:T(1,128)}', space=vmem, size = 0x12000, scoped, tag = 'internal scratch']
  #allocation2 [shape = 'f32[16,256]{1,0:T(8,128)}', space=vmem, size = 0x4000, scoped, tag = 'scratch operand']
  %s0 = inlined_call_operand.hbm [shape: f32[16,32], index: 0, kind: input, shape index: {}]
  %s1 = inlined_call_operand.hbm [shape: bf16[32,256], index: 1, kind: input, shape index: {}]
  %s2 = inlined_call_operand.vmem [shape: f32[1,256], index: 2, kind: input, shape index: {}]
  %s3 = inlined_call_operand.hbm [shape: bf16[256,128], index: 3, kind: input, shape index: {}]
  %s4 = inlined_call_operand.vmem [shape: f32[1,128], index: 4, kind: input, shape index: {}]
  %s5 = inlined_call_operand.hbm [shape: f32[16,128], index: 5, kind: output, shape index: {}]
  %s6 = sld [smem:[#allocation0]]
  $region50: #{tpu_custom_call.1} parent=0
    _
  %s8 = ssub.s32 1, %s6
  %s9 = scalar_select 0, %s8, %s6
  $region1: #{tpu_custom_call.1} parent=0
    #allocation3 [shape = 'u8[8192]{0}', space=vmem, size = 0x2000, scoped, tag = 'input window, operand 0, single buffered']
    #allocation4 [shape = 's32[1]{0}', space=sflag, size = 0x4, scoped, tag = 'scoped memory for tpu_custom_call.1']
    #allocation5 [shape = 's32[1]{0}', space=sflag, size = 0x4, scoped, tag = 'scoped memory for tpu_custom_call.1']
    #allocation6 [shape = 'u8[16384]{0}', space=vmem, size = 0x4000, scoped, tag = 'input window, operand 1, single buffered']
    #allocation7 [shape = 's32[1]{0}', space=sflag, size = 0x4, scoped, tag = 'scoped memory for tpu_custom_call.1']
    #allocation8 [shape = 'u8[65536]{0}', space=vmem, size = 0x10000, scoped, tag = 'input window, operand 3, single buffered']
    #allocation9 [shape = 'u8[8192]{0}', space=vmem, size = 0x2000, scoped, tag = 'output window, operand 0, single buffered']
    %10 = vsyncpa [#allocation4], 0
    %11 = vsyncpa [#allocation7], 0
    %12 = vsyncpa [#allocation5], 0
    // Predicated region
    $region2: #{tpu_custom_call.1} parent=1 // pred_check
      _
    $region3: #{tpu_custom_call.1} parent=1 // pred_check_branch
      %14 = sbr.rel (0) target = $region5
    $region4: #{tpu_custom_call.1} parent=1 // pred_region
      %s16 = ssub.s32 256, 256
      %17 = vsyncadd [#allocation4], %s16
      %s18 = sshll.u32 [#allocation3], 4
      %s19 = int_to_ptr.vmem [resolvable:$true] %s18
      %24 = dma.hbm_to_vmem [thread:$0]  %s0, 256, %s19, [#allocation4], 128, 128, 8
    $region5: #{tpu_custom_call.1} parent=1 // pred_fallthru
      _
    // Predicated region
    $region6: #{tpu_custom_call.1} parent=1 // pred_check
      _
    $region7: #{tpu_custom_call.1} parent=1 // pred_check_branch
      %26 = sbr.rel (0) target = $region9
    $region8: #{tpu_custom_call.1} parent=1 // pred_region
      %s28 = ssub.s32 512, 512
      %29 = vsyncadd [#allocation7], %s28
      %s30 = sshll.u32 [#allocation6], 4
      %s31 = int_to_ptr.vmem [resolvable:$true] %s30
      %36 = dma.hbm_to_vmem [thread:$0]  %s1, 512, %s31, [#allocation7], 128, 128, 8
    $region9: #{tpu_custom_call.1} parent=1 // pred_fallthru
      _
    // Predicated region
    $region10: #{tpu_custom_call.1} parent=1 // pred_check
      _
    $region11: #{tpu_custom_call.1} parent=1 // pred_check_branch
      %38 = sbr.rel (0) target = $region13
    $region12: #{tpu_custom_call.1} parent=1 // pred_region
      _
    $region13: #{tpu_custom_call.1} parent=1 // pred_fallthru
      _
    // Predicated region
    $region14: #{tpu_custom_call.1} parent=1 // pred_check
      _
    $region15: #{tpu_custom_call.1} parent=1 // pred_check_branch
      %40 = sbr.rel (0) target = $region17
    $region16: #{tpu_custom_call.1} parent=1 // pred_region
      %s42 = ssub.s32 2048, 2048
      %43 = vsyncadd [#allocation7], %s42
      %s44 = sshll.u32 [#allocation8], 4
      %s45 = int_to_ptr.vmem [resolvable:$true] %s44
      %50 = dma.hbm_to_vmem [thread:$0]  %s3, 2048, %s45, [#allocation7], 64, 64, 4
    $region17: #{tpu_custom_call.1} parent=1 // pred_fallthru
      _
    // Predicated region
    $region18: #{tpu_custom_call.1} parent=1 // pred_check
      _
    $region19: #{tpu_custom_call.1} parent=1 // pred_check_branch
      %52 = sbr.rel (0) target = $region21
    $region20: #{tpu_custom_call.1} parent=1 // pred_region
      _
    $region21: #{tpu_custom_call.1} parent=1 // pred_fallthru
      _
    // Predicated region
    $region22: #{tpu_custom_call.1} parent=1 // pred_check
      _
    $region23: #{tpu_custom_call.1} parent=1 // pred_check_branch
      %54 = sbr.rel (0) target = $region25
    $region24: #{tpu_custom_call.1} parent=1 // pred_region
      %55 = dma.done [#allocation4], 256
    $region25: #{tpu_custom_call.1} parent=1 // pred_fallthru
      _
    // Predicated region
    $region26: #{tpu_custom_call.1} parent=1 // pred_check
      _
    $region27: #{tpu_custom_call.1} parent=1 // pred_check_branch
      %57 = sbr.rel (0) target = $region29
    $region28: #{tpu_custom_call.1} parent=1 // pred_region
      %58 = dma.done [#allocation7], 512
    $region29: #{tpu_custom_call.1} parent=1 // pred_fallthru
      _
    // Predicated region
    $region30: #{tpu_custom_call.1} parent=1 // pred_check
      _
    $region31: #{tpu_custom_call.1} parent=1 // pred_check_branch
      %60 = sbr.rel (0) target = $region33
    $region32: #{tpu_custom_call.1} parent=1 // pred_region
      %61 = dma.done [#allocation7], 2048
    $region33: #{tpu_custom_call.1} parent=1 // pred_fallthru
      _
    %p63 = scmp.eq.s32.totalorder 0, 0
    // Predicated region
    $region34: #{tpu_custom_call.1} parent=1 // pred_check
      %p64 = pneg %p63
    $region35: #{tpu_custom_call.1} parent=1 // pred_check_branch
      %66 = sbr.rel (%p64) target = $region37
    $region36: #{tpu_custom_call.1} parent=1 // pred_region
      %67 = vst [vmem:[#allocation2] sm:$0xff] 0.0
      %68 = vst [vmem:[#allocation2 + $0x8] sm:$0xff] 0.0
      %69 = vst [vmem:[#allocation2 + $0x10] sm:$0xff] 0.0
      %70 = vst [vmem:[#allocation2 + $0x18] sm:$0xff] 0.0
    $region37: #{tpu_custom_call.1} parent=1 // pred_fallthru
      _
    %v71 = vld [vmem:[#allocation2] sm:$0xff]
    %v72 = vld [vmem:[#allocation2 + $0x8] sm:$0xff]
    %v73 = vld [vmem:[#allocation2 + $0x10] sm:$0xff]
    %v74 = vld [vmem:[#allocation2 + $0x18] sm:$0xff]
    %v75 = vld [vmem:[#allocation3] sm:$0xff]
    %v76 = vld [vmem:[#allocation3 + $0x8] sm:$0xff]
    %v77 = vpack.c.bf16 %v76, %v75
    %v78 = vld [vmem:[#allocation6] sm:$0xff]
    %v79 = vld [vmem:[#allocation6 + $0x8] sm:$0xff]
    %v80 = vld [vmem:[#allocation6 + $0x10] sm:$0xff]
    %v81 = vld [vmem:[#allocation6 + $0x18] sm:$0xff]
    %v86 = vunpack.c.l.b16 %v78
    %v87 = vunpack.c.h.b16 %v78
    %v88 = vunpack.c.l.b16 %v79
    %v89 = vunpack.c.h.b16 %v79
    %v90 = vunpack.c.l.b16 %v80
    %v91 = vunpack.c.h.b16 %v80
    %v92 = vunpack.c.l.b16 %v81
    %v93 = vunpack.c.h.b16 %v81
    %v94 = vpack.c.b16 %v88, %v86
    %v95 = vpack.c.b16 %v89, %v87
    %v96 = vpack.c.b16 %v92, %v90
    %v97 = vpack.c.b16 %v93, %v91
    %vm102 = vcmask 261120
    %v104 = vsel %vm102, %v77, 0
    %106 = vmatprep.subr.bf16.mxu0 %v95
    %107 = vmatpush1.bf16.msra.mxu0 %v94
    %108 = vmatprep.subr.bf16.mxu0 %v97
    %109 = vmatpush1.bf16.msra.mxu0 %v96
    %110 = vmatprep.subr.bf16.mxu0 0
    %111 = vmatpush1.bf16.msra.mxu0 0
    %112 = vmatprep.subr.bf16.mxu0 0
    %113 = vmatpush1.bf16.msra.mxu0 0
    %114 = vmatprep.subr.bf16.mxu0 0
    %115 = vmatpush1.bf16.msra.mxu0 0
    %116 = vmatprep.subr.bf16.mxu0 0
    %117 = vmatpush1.bf16.msra.mxu0 0
    %118 = vmatprep.subr.bf16.mxu0 0
    %119 = vmatpush1.bf16.msra.mxu0 0
    %120 = vmatprep.subr.bf16.mxu0 0
    %121 = vmatpush1.bf16.msra.mxu0 0
    %122 = vmatprep.subr.bf16.mxu0 0
    %123 = vmatpush1.bf16.msra.mxu0 0
    %124 = vmatprep.subr.bf16.mxu0 0
    %125 = vmatpush1.bf16.msra.mxu0 0
    %126 = vmatprep.subr.bf16.mxu0 0
    %127 = vmatpush1.bf16.msra.mxu0 0
    %128 = vmatprep.subr.bf16.mxu0 0
    %129 = vmatpush1.bf16.msra.mxu0 0
    %130 = vmatprep.subr.bf16.mxu0 0
    %131 = vmatpush1.bf16.msra.mxu0 0
    %132 = vmatprep.subr.bf16.mxu0 0
    %133 = vmatpush1.bf16.msra.mxu0 0
    %134 = vmatprep.subr.bf16.mxu0 0
    %135 = vmatpush1.bf16.msra.mxu0 0
    %136 = vmatprep.subr.bf16.mxu0 0
    %137 = vmatpush1.bf16.msra.mxu0 0
    %138 = vmatprep.mubr.bf16.mxu0 0
    %139 = vmatmul.mubr.bf16.gmra.mrb[0].mxu0 %v104
    %v140 = vpop.f32.mrb[0].mxu0
    %v141 = vadd.f32 0.0, %v140
    %v142 = vpop.f32.mrb[0].mxu0
    %v143 = vadd.f32 0.0, %v142
    %v144 = vpop.f32.mrb[0].mxu0
    %v145 = vadd.f32 0.0, %v144
    %v146 = vpop.f32.mrb[0].mxu0
    %v147 = vadd.f32 0.0, %v146
    %148 = vdwg.mxu0
    %v149 = vadd.f32 %v71, %v141
    %v150 = vadd.f32 %v72, %v143
    %v151 = vadd.f32 %v73, %v145
    %v152 = vadd.f32 %v74, %v147
    %153 = vst [vmem:[#allocation2] sm:$0xff] %v149
    %154 = vst [vmem:[#allocation2 + $0x8] sm:$0xff] %v150
    %155 = vst [vmem:[#allocation2 + $0x10] sm:$0xff] %v151
    %156 = vst [vmem:[#allocation2 + $0x18] sm:$0xff] %v152
    // Predicated region
    $region38: #{tpu_custom_call.1} parent=1 // pred_check
      %p157 = pneg %p63
    $region39: #{tpu_custom_call.1} parent=1 // pred_check_branch
      %159 = sbr.rel (%p157) target = $region41
    $region40: #{tpu_custom_call.1} parent=1 // pred_region
      %v160 = vld [vmem:[#allocation2] sm:$0xff]
      %v161 = vld [vmem:[#allocation2 + $0x8] sm:$0xff]
      %v162 = vld [vmem:[#allocation2 + $0x10] sm:$0xff]
      %v163 = vld [vmem:[#allocation2 + $0x18] sm:$0xff]
      %v164 = vld [vmem:[%s2] sm:$0x3]
      %v166 = vlaneseq
      %v167 = vshrl.u32 %v166, 7
      %v168 = vsub.s32 0, %v167
      %v169 = vrot.slane %v164, %v168
      %v170 = vlaneseq
      %v171 = vshrl.u32 %v170, 7
      %v172 = vsub.s32 1, %v171
      %v173 = vrot.slane %v164, %v172
      %v176 = vadd.f32 %v160, %v169
      %v177 = vadd.f32 %v161, %v173
      %v178 = vadd.f32 %v162, %v169
      %v179 = vadd.f32 %v163, %v173
      %v180 = vmax.f32 %v176, 0.0
      %v181 = vmax.f32 %v177, 0.0
      %v182 = vmax.f32 %v178, 0.0
      %v183 = vmax.f32 %v179, 0.0
      %v184 = vpack.c.bf16 %v182, %v180
      %v185 = vpack.c.bf16 %v183, %v181
      %v186 = vld [vmem:[#allocation8] sm:$0xf]
      %v187 = vld [vmem:[#allocation8 + $0x4] sm:$0xf]
      %v188 = vld [vmem:[#allocation8 + $0x8] sm:$0xf]
      %v189 = vld [vmem:[#allocation8 + $0xc] sm:$0xf]
      %v190 = vld [vmem:[#allocation8 + $0x10] sm:$0xf]
      %v191 = vld [vmem:[#allocation8 + $0x14] sm:$0xf]
      %v192 = vld [vmem:[#allocation8 + $0x18] sm:$0xf]
      %v193 = vld [vmem:[#allocation8 + $0x1c] sm:$0xf]
      %v194 = vld [vmem:[#allocation8 + $0x20] sm:$0xf]
      %v195 = vld [vmem:[#allocation8 + $0x24] sm:$0xf]
      %v196 = vld [vmem:[#allocation8 + $0x28] sm:$0xf]
      %v197 = vld [vmem:[#allocation8 + $0x2c] sm:$0xf]
      %v198 = vld [vmem:[#allocation8 + $0x30] sm:$0xf]
      %v199 = vld [vmem:[#allocation8 + $0x34] sm:$0xf]
      %v200 = vld [vmem:[#allocation8 + $0x38] sm:$0xf]
      %v201 = vld [vmem:[#allocation8 + $0x3c] sm:$0xf]
      %v202 = vld [vmem:[#allocation8 + $0x40] sm:$0xf]
      %v203 = vld [vmem:[#allocation8 + $0x44] sm:$0xf]
      %v204 = vld [vmem:[#allocation8 + $0x48] sm:$0xf]
      %v205 = vld [vmem:[#allocation8 + $0x4c] sm:$0xf]
      %v206 = vld [vmem:[#allocation8 + $0x50] sm:$0xf]
      %v207 = vld [vmem:[#allocation8 + $0x54] sm:$0xf]
      %v208 = vld [vmem:[#allocation8 + $0x58] sm:$0xf]
      %v209 = vld [vmem:[#allocation8 + $0x5c] sm:$0xf]
      %v210 = vld [vmem:[#allocation8 + $0x60] sm:$0xf]
      %v211 = vld [vmem:[#allocation8 + $0x64] sm:$0xf]
      %v212 = vld [vmem:[#allocation8 + $0x68] sm:$0xf]
      %v213 = vld [vmem:[#allocation8 + $0x6c] sm:$0xf]
      %v214 = vld [vmem:[#allocation8 + $0x70] sm:$0xf]
      %v215 = vld [vmem:[#allocation8 + $0x74] sm:$0xf]
      %v216 = vld [vmem:[#allocation8 + $0x78] sm:$0xf]
      %v217 = vld [vmem:[#allocation8 + $0x7c] sm:$0xf]
      %v218 = vld [vmem:[%s4] sm:$0x1]
      %v220 = vlaneseq
      %v221 = vshrl.u32 %v220, 7
      %v222 = vsub.s32 0, %v221
      %v223 = vrot.slane %v218, %v222
      %v257 = vunpack.c.l.b16 %v186
      %v258 = vunpack.c.l.b16 %v187
      %v259 = vunpack.c.l.b16 %v188
      %v260 = vunpack.c.l.b16 %v189
      %v261 = vunpack.c.l.b16 %v190
      %v262 = vunpack.c.l.b16 %v191
      %v263 = vunpack.c.l.b16 %v192
      %v264 = vunpack.c.l.b16 %v193
      %v265 = vunpack.c.l.b16 %v194
      %v266 = vunpack.c.l.b16 %v195
      %v267 = vunpack.c.l.b16 %v196
      %v268 = vunpack.c.l.b16 %v197
      %v269 = vunpack.c.l.b16 %v198
      %v270 = vunpack.c.l.b16 %v199
      %v271 = vunpack.c.l.b16 %v200
      %v272 = vunpack.c.l.b16 %v201
      %v273 = vunpack.c.l.b16 %v202
      %v274 = vunpack.c.l.b16 %v203
      %v275 = vunpack.c.l.b16 %v204
      %v276 = vunpack.c.l.b16 %v205
      %v277 = vunpack.c.l.b16 %v206
      %v278 = vunpack.c.l.b16 %v207
      %v279 = vunpack.c.l.b16 %v208
      %v280 = vunpack.c.l.b16 %v209
      %v281 = vunpack.c.l.b16 %v210
      %v282 = vunpack.c.l.b16 %v211
      %v283 = vunpack.c.l.b16 %v212
      %v284 = vunpack.c.l.b16 %v213
      %v285 = vunpack.c.l.b16 %v214
      %v286 = vunpack.c.l.b16 %v215
      %v287 = vunpack.c.l.b16 %v216
      %v288 = vunpack.c.l.b16 %v217
      %v289 = vpack.c.b16 %v258, %v257
      %v290 = vpack.c.b16 %v260, %v259
      %v291 = vpack.c.b16 %v262, %v261
      %v292 = vpack.c.b16 %v264, %v263
      %v293 = vpack.c.b16 %v266, %v265
      %v294 = vpack.c.b16 %v268, %v267
      %v295 = vpack.c.b16 %v270, %v269
      %v296 = vpack.c.b16 %v272, %v271
      %v297 = vpack.c.b16 %v274, %v273
      %v298 = vpack.c.b16 %v276, %v275
      %v299 = vpack.c.b16 %v278, %v277
      %v300 = vpack.c.b16 %v280, %v279
      %v301 = vpack.c.b16 %v282, %v281
      %v302 = vpack.c.b16 %v284, %v283
      %v303 = vpack.c.b16 %v286, %v285
      %v304 = vpack.c.b16 %v288, %v287
      %321 = vmatprep.subr.bf16.mxu0 0
      %322 = vmatpush1.bf16.msra.mxu0 %v289
      %323 = vmatprep.subr.bf16.mxu0 0
      %324 = vmatpush1.bf16.msra.mxu0 %v290
      %325 = vmatprep.subr.bf16.mxu0 0
      %326 = vmatpush1.bf16.msra.mxu0 %v291
      %327 = vmatprep.subr.bf16.mxu0 0
      %328 = vmatpush1.bf16.msra.mxu0 %v292
      %329 = vmatprep.subr.bf16.mxu0 0
      %330 = vmatpush1.bf16.msra.mxu0 %v293
      %331 = vmatprep.subr.bf16.mxu0 0
      %332 = vmatpush1.bf16.msra.mxu0 %v294
      %333 = vmatprep.subr.bf16.mxu0 0
      %334 = vmatpush1.bf16.msra.mxu0 %v295
      %335 = vmatprep.subr.bf16.mxu0 0
      %336 = vmatpush1.bf16.msra.mxu0 %v296
      %337 = vmatprep.subr.bf16.mxu0 0
      %338 = vmatpush1.bf16.msra.mxu0 %v297
      %339 = vmatprep.subr.bf16.mxu0 0
      %340 = vmatpush1.bf16.msra.mxu0 %v298
      %341 = vmatprep.subr.bf16.mxu0 0
      %342 = vmatpush1.bf16.msra.mxu0 %v299
      %343 = vmatprep.subr.bf16.mxu0 0
      %344 = vmatpush1.bf16.msra.mxu0 %v300
      %345 = vmatprep.subr.bf16.mxu0 0
      %346 = vmatpush1.bf16.msra.mxu0 %v301
      %347 = vmatprep.subr.bf16.mxu0 0
      %348 = vmatpush1.bf16.msra.mxu0 %v302
      %349 = vmatprep.subr.bf16.mxu0 0
      %350 = vmatpush1.bf16.msra.mxu0 %v303
      %351 = vmatprep.subr.bf16.mxu0 0
      %352 = vmatpush1.bf16.msra.mxu0 %v304
      %353 = vmatprep.mubr.bf16.mxu0 %v185
      %354 = vmatmul.mubr.bf16.gmra.mrb[0].mxu0 %v184
      %v355 = vpop.f32.mrb[0].mxu0
      %v356 = vadd.f32 %v223, %v355
      %v357 = vpop.f32.mrb[0].mxu0
      %v358 = vpop.f32.mrb[0].mxu0
      %v359 = vadd.f32 %v223, %v358
      %v360 = vpop.f32.mrb[0].mxu0
      %361 = vdwg.mxu0
      %362 = vst [vmem:[#allocation9] sm:$0xff] %v356
      %363 = vst [vmem:[#allocation9 + $0x8] sm:$0xff] %v359
    $region41: #{tpu_custom_call.1} parent=1 // pred_fallthru
      _
    // Predicated region
    $region42: #{tpu_custom_call.1} parent=1 // pred_check
      _
    $region43: #{tpu_custom_call.1} parent=1 // pred_check_branch
      %365 = sbr.rel (0) target = $region45
    $region44: #{tpu_custom_call.1} parent=1 // pred_region
      %s367 = ssub.s32 256, 256
      %368 = vsyncadd [#allocation5], %s367
      %s369 = sshll.u32 [#allocation9], 4
      %s370 = int_to_ptr.vmem [resolvable:$true] %s369
      %375 = dma.vmem_to_hbm [thread:$0]  %s370, 256, %s5, [#allocation5], 128, 128, 8
    $region45: #{tpu_custom_call.1} parent=1 // pred_fallthru
      _
    // Predicated region
    $region46: #{tpu_custom_call.1} parent=1 // pred_check
      _
    $region47: #{tpu_custom_call.1} parent=1 // pred_check_branch
      %377 = sbr.rel (0) target = $region49
    $region48: #{tpu_custom_call.1} parent=1 // pred_region
      %378 = dma.done [#allocation5], 256
    $region49: #{tpu_custom_call.1} parent=1 // pred_fallthru
      _
    %379 = vsyncpa [#allocation4], 1
    %380 = vsyncpa [#allocation7], 1
    %381 = vsyncpa [#allocation5], 1

</llo_original>
